<compile_context>
chip_gen: v5e
topology: v5e:2x2
jax: 0.10.0
libtpu: 0.0.40
codegen_flags: <defaults>
</compile_context>

<pallas_src>
import functools

import jax
import jax.numpy as jnp
from jax.experimental import pallas as pl
from jax.experimental.pallas import tpu as pltpu

_LANES = 128
_SUBLANES = 8
_ALIGN = _SUBLANES * _LANES        # pad granularity: 1024 elements
_MAX_BLOCK_ROWS = 2048             # (2048,128) f32 block = 1 MiB
                                   # 4 arrays x 2 buffers x 1 MiB = 8 MiB < 16 MiB (v5e default)


def _elementwise_kernel(x_ref, t_ref, w_ref, o_ref, *, alpha, beta):
    """(x - t)^2 / (alpha*w + beta) on one (block_rows, 128) tile."""
    w = alpha * w_ref[...] + beta
    d = x_ref[...] - t_ref[...]
    o_ref[...] = (d * d) * pl.reciprocal(w, approx=False)


def _partial_sum_kernel(x_ref, t_ref, w_ref, o_ref, *, alpha, beta,
                        block_rows, valid_rows, needs_mask):
    """Per-block partial sum, written as an (8, 128) lane-dense slab.

    Grid is fully parallel: each step owns its own output block, the final
    (tiny) reduction over num_blocks*8*128 partials happens in the wrapper.
    """
    w = alpha * w_ref[...] + beta
    d = x_ref[...] - t_ref[...]
    val = (d * d) * pl.reciprocal(w, approx=False)
    if needs_mask:
        # Last block may extend past the array; zero out-of-range rows.
        row0 = pl.program_id(0) * block_rows
        row_ids = row0 + jax.lax.broadcasted_iota(jnp.int32, val.shape, 0)
        val = jnp.where(row_ids < valid_rows, val, 0.0)
    # Sublane-group reduce (block_rows,128) -> (8,128): pure VPU adds, the
    # cross-lane XLU reduce is deferred to the wrapper's jnp.sum.
    o_ref[...] = val.reshape(block_rows // _SUBLANES, _SUBLANES, _LANES).sum(axis=0)


def _as_slab(x, pad_value, n, n_padded):
    """Flatten to a lane-dense (rows, 128) f32 slab; pad only if needed."""
    x = jnp.ravel(x).astype(jnp.float32)
    if n_padded != n:
        x = jnp.pad(x, (0, n_padded - n), constant_values=pad_value)
    return x.reshape(-1, _LANES)


def norm_mse_loss(inputs, target, weights, *, reduction="none",
                  alpha=0.1, beta=0.001):
    orig_shape = inputs.shape
    n = int(inputs.size)
    n_padded = ((n + _ALIGN - 1) // _ALIGN) * _ALIGN

    # Padded slots (if any) contribute exactly 0: diff = 0 - 0, divisor = alpha*1 + beta.
    x2 = _as_slab(inputs, 0.0, n, n_padded)
    t2 = _as_slab(target, 0.0, n, n_padded)
    w2 = _as_slab(weights, 1.0, n, n_padded)

    rows = n_padded // _LANES                 # multiple of 8
    block_rows = min(_MAX_BLOCK_ROWS, rows)   # multiple of 8
    num_blocks = pl.cdiv(rows, block_rows)

    in_spec = pl.BlockSpec((block_rows, _LANES), lambda i: (i, 0))
    cost = pl.CostEstimate(flops=5 * n_padded,
                           transcendentals=n_padded,
                           bytes_accessed=16 * n_padded)

    if reduction == "none":
        kernel = functools.partial(_elementwise_kernel, alpha=alpha, beta=beta)
        out = pl.pallas_call(
            kernel,
            out_shape=jax.ShapeDtypeStruct((rows, _LANES), jnp.float32),
            grid_spec=pltpu.PrefetchScalarGridSpec(
                num_scalar_prefetch=0,
                grid=(num_blocks,),
                in_specs=[in_spec, in_spec, in_spec],
                out_specs=pl.BlockSpec((block_rows, _LANES), lambda i: (i, 0)),
            ),
            compiler_params=pltpu.CompilerParams(
                dimension_semantics=("parallel",)),
            cost_estimate=cost,
        )(x2, t2, w2)
        if n_padded == n:
            return out.reshape(orig_shape)      # no extra slice copy when aligned
        return out.reshape(-1)[:n].reshape(orig_shape)

    # 'sum' or 'mean': parallel per-block partial sums + tiny wrapper reduce.
    kernel = functools.partial(
        _partial_sum_kernel, alpha=alpha, beta=beta, block_rows=block_rows,
        valid_rows=rows, needs_mask=(rows % block_rows != 0))
    partials = pl.pallas_call(
        kernel,
        out_shape=jax.ShapeDtypeStruct((num_blocks * _SUBLANES, _LANES),
                                       jnp.float32),
        grid_spec=pltpu.PrefetchScalarGridSpec(
            num_scalar_prefetch=0,
            grid=(num_blocks,),
            in_specs=[in_spec, in_spec, in_spec],
            out_specs=pl.BlockSpec((_SUBLANES, _LANES), lambda i: (i, 0)),
        ),
        compiler_params=pltpu.CompilerParams(
            dimension_semantics=("parallel",)),
        cost_estimate=cost,
    )(x2, t2, w2)

    total = jnp.sum(partials)
    if reduction == "mean":
        return total / jnp.float32(n)
    return total


if __name__ == "__main__":
    key = jax.random.PRNGKey(0)
    alpha, beta = 0.1, 0.001

    # Shapes: aligned NCHW (no padding), ragged (padding path),
    # multi-block with partial last block (mask path).
    shapes = [(2, 4, 16, 16), (3, 5, 7, 11), (1, 8, 200, 200)]

    for shape in shapes:
        k1, k2, k3, key = jax.random.split(key, 4)
        x = jax.random.normal(k1, shape, jnp.float32)
        t = jax.random.normal(k2, shape, jnp.float32)
        w = jax.random.uniform(k3, shape, jnp.float32, minval=0.1, maxval=1.0)

        out_none = jax.block_until_ready(
            norm_mse_loss(x, t, w, reduction="none", alpha=alpha, beta=beta))
        out_sum = jax.block_until_ready(
            norm_mse_loss(x, t, w, reduction="sum", alpha=alpha, beta=beta))
        out_mean = jax.block_until_ready(
            norm_mse_loss(x, t, w, reduction="mean", alpha=alpha, beta=beta))

        # Pure-JAX reference.
        ref = (x - t) ** 2 / (alpha * w + beta)
        assert out_none.shape == shape
        assert jnp.allclose(out_none, ref, rtol=1e-5, atol=1e-5)
        assert jnp.allclose(out_sum, jnp.sum(ref), rtol=2e-4, atol=1e-3)
        assert jnp.allclose(out_mean, jnp.mean(ref), rtol=2e-4, atol=1e-5)

    print("KERNEL_OK")
</pallas_src>

<mosaic_0001>
module attributes {stable_mosaic.version = 11 : i64} {
  func.func @_elementwise_kernel(%arg0: i32, %arg1: memref<16x128xf32, #tpu.memory_space<vmem>>, %arg2: memref<16x128xf32, #tpu.memory_space<vmem>>, %arg3: memref<16x128xf32, #tpu.memory_space<vmem>>, %arg4: memref<16x128xf32, #tpu.memory_space<vmem>>) attributes {dimension_semantics = [#tpu.dimension_semantics<parallel>], iteration_bounds = array<i64: 1>, scalar_prefetch = 0 : i64, scratch_operands = 0 : i64, tpu.core_type = #tpu.core_type<tc>, window_params = [{transform_indices = @transform_0, window_bounds = array<i64: 16, 128>}, {transform_indices = @transform_1, window_bounds = array<i64: 16, 128>}, {transform_indices = @transform_2, window_bounds = array<i64: 16, 128>}, {transform_indices = @transform_3, window_bounds = array<i64: 16, 128>}]} {
    %c0 = arith.constant 0 : index
    %c0_0 = arith.constant 0 : index
    %0 = vector.load %arg3[%c0, %c0_0] : memref<16x128xf32, #tpu.memory_space<vmem>>, vector<16x128xf32>
    %cst = arith.constant 1.000000e-01 : f32
    %1 = vector.broadcast %cst : f32 to vector<16x128xf32>
    %2 = arith.mulf %1, %0 : vector<16x128xf32>
    %cst_1 = arith.constant 1.000000e-03 : f32
    %3 = vector.broadcast %cst_1 : f32 to vector<16x128xf32>
    %4 = arith.addf %2, %3 : vector<16x128xf32>
    %c0_2 = arith.constant 0 : index
    %c0_3 = arith.constant 0 : index
    %5 = vector.load %arg1[%c0_2, %c0_3] : memref<16x128xf32, #tpu.memory_space<vmem>>, vector<16x128xf32>
    %c0_4 = arith.constant 0 : index
    %c0_5 = arith.constant 0 : index
    %6 = vector.load %arg2[%c0_4, %c0_5] : memref<16x128xf32, #tpu.memory_space<vmem>>, vector<16x128xf32>
    %7 = arith.subf %5, %6 : vector<16x128xf32>
    %8 = arith.mulf %7, %7 : vector<16x128xf32>
    %9 = tpu.reciprocal %4 : vector<16x128xf32> -> vector<16x128xf32>
    %10 = arith.mulf %8, %9 : vector<16x128xf32>
    %c0_6 = arith.constant 0 : index
    %c0_7 = arith.constant 0 : index
    %11 = vector.load %arg4[%c0_6, %c0_7] : memref<16x128xf32, #tpu.memory_space<vmem>>, vector<16x128xf32>
    tpu.vector_store %arg4[%c0_6, %c0_7], %10 {strides = array<i32>} : memref<16x128xf32, #tpu.memory_space<vmem>>, vector<16x128xf32>,
    return
  }
  func.func @transform_0(%arg0: i32) -> (i32, i32) {
    %c0_i32 = arith.constant 0 : i32
    %c0_i32_0 = arith.constant 0 : i32
    return %arg0, %c0_i32 : i32, i32
  }
  func.func @transform_1(%arg0: i32) -> (i32, i32) {
    %c0_i32 = arith.constant 0 : i32
    %c0_i32_0 = arith.constant 0 : i32
    return %arg0, %c0_i32 : i32, i32
  }
  func.func @transform_2(%arg0: i32) -> (i32, i32) {
    %c0_i32 = arith.constant 0 : i32
    %c0_i32_0 = arith.constant 0 : i32
    return %arg0, %c0_i32 : i32, i32
  }
  func.func @transform_3(%arg0: i32) -> (i32, i32) {
    %c0_i32 = arith.constant 0 : i32
    %c0_i32_0 = arith.constant 0 : i32
    return %arg0, %c0_i32 : i32, i32
  }
}

</mosaic_0001>

<llo_original>
// kernel: tpu_custom_call.1
$region0: #{tpu_custom_call.1}
  #allocation0 [shape = 'u32[]', space=smem, size = 0x4, offset = 0x4, fixed_abs, tag = 'smem constant byte address 0x4 - core index']
  #allocation1 [shape = 'u32[72,128]{1,0:T(1,128)}', space=vmem, size = 0x9000, scoped, tag = 'internal scratch']
  %s0 = inlined_call_operand.hbm [shape: f32[16,128], index: 0, kind: input, shape index: {}]
  %s1 = inlined_call_operand.hbm [shape: f32[16,128], index: 1, kind: input, shape index: {}]
  %s2 = inlined_call_operand.hbm [shape: f32[16,128], index: 2, kind: input, shape index: {}]
  %s3 = inlined_call_operand.hbm [shape: f32[16,128], index: 3, kind: output, shape index: {}]
  %s4 = sld [smem:[#allocation0]]
  $region34: #{tpu_custom_call.1} parent=0
    _
  %s6 = ssub.s32 1, %s4
  %s7 = scalar_select 0, %s6, %s4
  $region1: #{tpu_custom_call.1} parent=0
    #allocation2 [shape = 'u8[8192]{0}', space=vmem, size = 0x2000, scoped, tag = 'input window, operand 0, single buffered']
    #allocation3 [shape = 's32[1]{0}', space=sflag, size = 0x4, scoped, tag = 'scoped memory for tpu_custom_call.1']
    #allocation4 [shape = 's32[1]{0}', space=sflag, size = 0x4, scoped, tag = 'scoped memory for tpu_custom_call.1']
    #allocation5 [shape = 'u8[8192]{0}', space=vmem, size = 0x2000, scoped, tag = 'input window, operand 1, single buffered']
    #allocation6 [shape = 's32[1]{0}', space=sflag, size = 0x4, scoped, tag = 'scoped memory for tpu_custom_call.1']
    #allocation7 [shape = 'u8[8192]{0}', space=vmem, size = 0x2000, scoped, tag = 'input window, operand 2, single buffered']
    #allocation8 [shape = 'u8[8192]{0}', space=vmem, size = 0x2000, scoped, tag = 'output window, operand 0, single buffered']
    %8 = vsyncpa [#allocation3], 0
    %9 = vsyncpa [#allocation6], 0
    %10 = vsyncpa [#allocation4], 0
    // Predicated region
    $region2: #{tpu_custom_call.1} parent=1 // pred_check
      _
    $region3: #{tpu_custom_call.1} parent=1 // pred_check_branch
      %12 = sbr.rel (0) target = $region5
    $region4: #{tpu_custom_call.1} parent=1 // pred_region
      %14 = vsyncadd [#allocation3], 0
      %s15 = sshll.u32 %s0, 4
      %s16 = int_to_ptr.hbm [resolvable:$true] %s15
      %s17 = sshll.u32 [#allocation2], 4
      %s18 = int_to_ptr.vmem [resolvable:$true] %s17
      %23 = dma.hbm_to_vmem [thread:$0]  %s16, 256, %s18, [#allocation3], 128, 128, 8
    $region5: #{tpu_custom_call.1} parent=1 // pred_fallthru
      _
    // Predicated region
    $region6: #{tpu_custom_call.1} parent=1 // pred_check
      _
    $region7: #{tpu_custom_call.1} parent=1 // pred_check_branch
      %25 = sbr.rel (0) target = $region9
    $region8: #{tpu_custom_call.1} parent=1 // pred_region
      %27 = vsyncadd [#allocation6], 0
      %s28 = sshll.u32 %s1, 4
      %s29 = int_to_ptr.hbm [resolvable:$true] %s28
      %s30 = sshll.u32 [#allocation5], 4
      %s31 = int_to_ptr.vmem [resolvable:$true] %s30
      %36 = dma.hbm_to_vmem [thread:$0]  %s29, 256, %s31, [#allocation6], 128, 128, 8
    $region9: #{tpu_custom_call.1} parent=1 // pred_fallthru
      _
    // Predicated region
    $region10: #{tpu_custom_call.1} parent=1 // pred_check
      _
    $region11: #{tpu_custom_call.1} parent=1 // pred_check_branch
      %38 = sbr.rel (0) target = $region13
    $region12: #{tpu_custom_call.1} parent=1 // pred_region
      %40 = vsyncadd [#allocation6], 0
      %s41 = sshll.u32 %s2, 4
      %s42 = int_to_ptr.hbm [resolvable:$true] %s41
      %s43 = sshll.u32 [#allocation7], 4
      %s44 = int_to_ptr.vmem [resolvable:$true] %s43
      %49 = dma.hbm_to_vmem [thread:$0]  %s42, 256, %s44, [#allocation6], 128, 128, 8
    $region13: #{tpu_custom_call.1} parent=1 // pred_fallthru
      _
    // Predicated region
    $region14: #{tpu_custom_call.1} parent=1 // pred_check
      _
    $region15: #{tpu_custom_call.1} parent=1 // pred_check_branch
      %51 = sbr.rel (0) target = $region17
    $region16: #{tpu_custom_call.1} parent=1 // pred_region
      %53 = dma.done [#allocation3], 256
    $region17: #{tpu_custom_call.1} parent=1 // pred_fallthru
      _
    // Predicated region
    $region18: #{tpu_custom_call.1} parent=1 // pred_check
      _
    $region19: #{tpu_custom_call.1} parent=1 // pred_check_branch
      %55 = sbr.rel (0) target = $region21
    $region20: #{tpu_custom_call.1} parent=1 // pred_region
      %57 = dma.done [#allocation6], 256
    $region21: #{tpu_custom_call.1} parent=1 // pred_fallthru
      _
    // Predicated region
    $region22: #{tpu_custom_call.1} parent=1 // pred_check
      _
    $region23: #{tpu_custom_call.1} parent=1 // pred_check_branch
      %59 = sbr.rel (0) target = $region25
    $region24: #{tpu_custom_call.1} parent=1 // pred_region
      %61 = dma.done [#allocation6], 256
    $region25: #{tpu_custom_call.1} parent=1 // pred_fallthru
      _
    %v62 = vld [vmem:[#allocation7] sm:$0xff]
    %v63 = vld [vmem:[#allocation7 + $0x8] sm:$0xff]
    %v64 = vmul.f32 %v62, 0.1
    %v65 = vmul.f32 %v63, 0.1
    %v66 = vadd.f32 %v64, 0.001
    %v67 = vadd.f32 %v65, 0.001
    %v68 = vld [vmem:[#allocation2] sm:$0xff]
    %v69 = vld [vmem:[#allocation2 + $0x8] sm:$0xff]
    %v70 = vld [vmem:[#allocation5] sm:$0xff]
    %v71 = vld [vmem:[#allocation5 + $0x8] sm:$0xff]
    %v72 = vsub.f32 %v68, %v70
    %v73 = vsub.f32 %v69, %v71
    %v74 = vmul.f32 %v72, %v72
    %v75 = vmul.f32 %v73, %v73
    %v76 = vrcp.pop %v66
    %v77 = vmul.f32 %v66, %v76
    %v78 = vsub.f32 1.0, %v77
    %v79 = vmul.f32 %v76, %v78
    %v80 = vadd.f32 %v76, %v79
    %vm81 = vweird.f32 %v66
    %vm82 = vweird.f32 %v76
    %vm83 = vmor %vm81, %vm82
    %v84 = vsel %vm83, %v76, %v80
    %v85 = vand.u32 2147483647, %v66
    %vm86 = vcmp.eq.f32.partialorder %v85, 8.507059e+37
    %v87 = vand.u32 %v66, 2147483648
    %v88 = vor.u32 1.1754944e-38, %v87
    %v89 = vsel %vm86, %v88, %v84
    %v90 = vrcp.pop %v67
    %v91 = vmul.f32 %v67, %v90
    %v92 = vsub.f32 1.0, %v91
    %v93 = vmul.f32 %v90, %v92
    %v94 = vadd.f32 %v90, %v93
    %vm95 = vweird.f32 %v67
    %vm96 = vweird.f32 %v90
    %vm97 = vmor %vm95, %vm96
    %v98 = vsel %vm97, %v90, %v94
    %v99 = vand.u32 2147483647, %v67
    %vm100 = vcmp.eq.f32.partialorder %v99, 8.507059e+37
    %v101 = vand.u32 %v67, 2147483648
    %v102 = vor.u32 1.1754944e-38, %v101
    %v103 = vsel %vm100, %v102, %v98
    %v104 = vmul.f32 %v74, %v89
    %v105 = vmul.f32 %v75, %v103
    %106 = vst [vmem:[#allocation8] sm:$0xff] %v104
    %107 = vst [vmem:[#allocation8 + $0x8] sm:$0xff] %v105
    // Predicated region
    $region26: #{tpu_custom_call.1} parent=1 // pred_check
      _
    $region27: #{tpu_custom_call.1} parent=1 // pred_check_branch
      %109 = sbr.rel (0) target = $region29
    $region28: #{tpu_custom_call.1} parent=1 // pred_region
      %111 = vsyncadd [#allocation4], 0
      %s112 = sshll.u32 [#allocation8], 4
      %s113 = int_to_ptr.vmem [resolvable:$true] %s112
      %s114 = sshll.u32 %s3, 4
      %s115 = int_to_ptr.hbm [resolvable:$true] %s114
      %120 = dma.vmem_to_hbm [thread:$0]  %s113, 256, %s115, [#allocation4], 128, 128, 8
    $region29: #{tpu_custom_call.1} parent=1 // pred_fallthru
      _
    // Predicated region
    $region30: #{tpu_custom_call.1} parent=1 // pred_check
      _
    $region31: #{tpu_custom_call.1} parent=1 // pred_check_branch
      %122 = sbr.rel (0) target = $region33
    $region32: #{tpu_custom_call.1} parent=1 // pred_region
      %124 = dma.done [#allocation4], 256
    $region33: #{tpu_custom_call.1} parent=1 // pred_fallthru
      _
    %125 = vsyncpa [#allocation3], 1
    %126 = vsyncpa [#allocation6], 1
    %127 = vsyncpa [#allocation4], 1

</llo_original>
